<compile_context>
chip_gen: v7x
topology: tpu7x:2x2x1
jax: 0.10.0
libtpu: 0.0.40
codegen_flags: <defaults>
</compile_context>

<pallas_src>
import functools

import jax
import jax.numpy as jnp
from jax import lax
from jax.experimental import pallas as pl
from jax.experimental.pallas import tpu as pltpu


def _shift_kernel(shift_ref, x_ref, o_ref, *, pad, nb):
    # shift_ref: int32[2*n] in SMEM (scalar-prefetched), flat (sx, sy) pairs.
    # x_ref / o_ref: (nb, c, h, w) VMEM blocks (nb batch elements, all channels).
    base = pl.program_id(0) * nb
    _, c, h, w = x_ref.shape

    # Static (unrolled) loop over the nb images of this block.  Each iteration
    # does O(c*h*w) work, so loop overhead is irrelevant; temps die at the
    # o_ref[i] store of each iteration.
    for i in range(nb):
        b = base + i
        sx = shift_ref[2 * b]      # shift along width  (grid x coordinate)
        sy = shift_ref[2 * b + 1]  # shift along height (grid y coordinate)

        x = x_ref[i]               # (c, h, w), kept in native dtype

        # One-hot gather matrices; replicate padding == index clamp.
        #   S  [l, j] = (l == clamp(j + sx - pad, 0, w-1))   width  gather
        #   A_T[k, r] = (k == clamp(r + sy - pad, 0, h-1))   height gather
        # One-hot selection is exact in any dtype, so no preferred_element_type
        # / f32 accumulation is needed.  (Do NOT drop that if these weights
        # ever stop being one-hot.)
        l_idx = lax.broadcasted_iota(jnp.int32, (w, w), 0)
        j_idx = lax.broadcasted_iota(jnp.int32, (w, w), 1)
        s_mat = (l_idx == jnp.clip(j_idx + sx - pad, 0, w - 1)).astype(x.dtype)

        k_idx = lax.broadcasted_iota(jnp.int32, (h, h), 0)
        r_idx = lax.broadcasted_iota(jnp.int32, (h, h), 1)
        a_t = (k_idx == jnp.clip(r_idx + sy - pad, 0, h - 1)).astype(x.dtype)

        # Width gather: one flattened matmul, M = c*h (good MXU occupancy).
        xw = jnp.dot(x.reshape(c * h, w), s_mat).reshape(c, h, w)

        # Height gather: minor-dims transpose (XLU) so h becomes the minor
        # axis, one flattened (c*w, h) @ (h, h) matmul, transpose back.
        xwt = jnp.swapaxes(xw, 1, 2).reshape(c * w, h)       # (c*w, h)
        yt = jnp.dot(xwt, a_t).reshape(c, w, h)              # (c, w, h)
        o_ref[i] = jnp.swapaxes(yt, 1, 2)                    # (c, h, w)


def random_shifts_aug(x, shifts, pad):
    """Pallas implementation of RandomShiftsAug.forward.

    x:      (n, c, h, w) float array, NCHW like PyTorch (h == w).
    shifts: (n, 2) int32 integer shifts, columns = (sx, sy), values expected in
            [0, 2*pad].  Out-of-range shifts clamp (replicate) rather than
            reproducing grid_sample's zero padding.
    """
    n, c, h, w = x.shape
    assert h == w
    assert shifts.shape == (n, 2)
    # One-hot int matmuls are unsupported on the v7x MXU; this path is for
    # float images (as in the original module).
    assert jnp.issubdtype(x.dtype, jnp.floating)

    # Batch elements per grid step: keep in+out double-buffering <= ~8 MiB so
    # it fits every generation's default scoped VMEM, cap at 16, divide n.
    elem_bytes = c * h * w * jnp.dtype(x.dtype).itemsize
    nb_cap = int(max(1, min(16, (8 * 1024 * 1024) // (4 * elem_bytes))))
    nb = max(d for d in range(1, min(n, nb_cap) + 1) if n % d == 0)

    shifts_flat = shifts.astype(jnp.int32).reshape(-1)  # [2n], (sx, sy) pairs

    kernel = functools.partial(_shift_kernel, pad=pad, nb=nb)
    return pl.pallas_call(
        kernel,
        out_shape=jax.ShapeDtypeStruct((n, c, h, w), x.dtype),
        grid_spec=pltpu.PrefetchScalarGridSpec(
            num_scalar_prefetch=1,
            grid=(n // nb,),
            in_specs=[pl.BlockSpec((nb, c, h, w), lambda b, s: (b, 0, 0, 0))],
            out_specs=pl.BlockSpec((nb, c, h, w), lambda b, s: (b, 0, 0, 0)),
        ),
        compiler_params=pltpu.CompilerParams(
            dimension_semantics=("parallel",),
        ),
    )(shifts_flat, x)


def _reference(x, shifts, pad):
    # Pure-JAX reference: replicate pad + integer crop (what grid_sample does here).
    n, c, h, w = x.shape
    xp = jnp.pad(x, ((0, 0), (0, 0), (pad, pad), (pad, pad)), mode="edge")
    outs = []
    for b in range(n):
        sx = int(shifts[b, 0])
        sy = int(shifts[b, 1])
        outs.append(lax.dynamic_slice(xp[b], (0, sy, sx), (c, h, w)))
    return jnp.stack(outs, axis=0)


if __name__ == "__main__":
    key = jax.random.PRNGKey(0)
    kx, ks = jax.random.split(key)

    n, c, h, w = 2, 4, 16, 16
    pad = 4  # RandomShiftsAug(pad=4)

    x = jax.random.normal(kx, (n, c, h, w), dtype=jnp.float32)
    # TODO(synk): torch.randint's RNG stream can't be reproduced; shifts are drawn
    # with jax.random but follow the same distribution (integers in [0, 2*pad]).
    shifts = jax.random.randint(ks, (n, 2), 0, 2 * pad + 1, dtype=jnp.int32)

    out = jax.block_until_ready(random_shifts_aug(x, shifts, pad))
    ref = _reference(x, shifts, pad)

    assert out.shape == (n, c, h, w)
    assert out.dtype == x.dtype
    assert jnp.allclose(out, ref, atol=1e-5, rtol=1e-5), "Pallas kernel mismatch vs reference"

    print("KERNEL_OK")
</pallas_src>

<mosaic_0001>
module attributes {stable_mosaic.version = 11 : i64} {
  func.func @_shift_kernel(%arg0: i32, %arg1: memref<4xi32, #tpu.memory_space<smem>>, %arg2: memref<2x4x16x16xf32, #tpu.memory_space<vmem>>, %arg3: memref<2x4x16x16xf32, #tpu.memory_space<vmem>>) attributes {dimension_semantics = [#tpu.dimension_semantics<parallel>], iteration_bounds = array<i64: 1>, scalar_prefetch = 1 : i64, scratch_operands = 0 : i64, tpu.core_type = #tpu.core_type<tc>, window_params = [{transform_indices = @transform_0, window_bounds = array<i64: 2, 4, 16, 16>}, {transform_indices = @transform_1, window_bounds = array<i64: 2, 4, 16, 16>}]} {
    %c2_i32 = arith.constant 2 : i32
    %0 = arith.muli %arg0, %c2_i32 : i32
    %c0_i32 = arith.constant 0 : i32
    %1 = arith.addi %0, %c0_i32 : i32
    %c2_i32_0 = arith.constant 2 : i32
    %2 = arith.muli %c2_i32_0, %1 : i32
    %3 = arith.index_cast %2 : i32 to index
    %4 = memref.load %arg1[%3] : memref<4xi32, #tpu.memory_space<smem>>
    %c2_i32_1 = arith.constant 2 : i32
    %5 = arith.muli %c2_i32_1, %1 : i32
    %c1_i32 = arith.constant 1 : i32
    %6 = arith.addi %5, %c1_i32 : i32
    %7 = arith.index_cast %6 : i32 to index
    %8 = memref.load %arg1[%7] : memref<4xi32, #tpu.memory_space<smem>>
    %c0 = arith.constant 0 : index
    %c0_2 = arith.constant 0 : index
    %c0_3 = arith.constant 0 : index
    %c0_4 = arith.constant 0 : index
    %9 = vector.load %arg2[%c0, %c0_2, %c0_3, %c0_4] : memref<2x4x16x16xf32, #tpu.memory_space<vmem>>, vector<1x4x16x16xf32>
    %10 = vector.shape_cast %9 : vector<1x4x16x16xf32> to vector<4x16x16xf32>
    %11 = tpu.iota {dimensions = array<i32: 0>} : vector<16x16xi32>
    %12 = tpu.iota {dimensions = array<i32: 1>} : vector<16x16xi32>
    %13 = vector.broadcast %4 : i32 to vector<16x16xi32>
    %14 = arith.addi %12, %13 : vector<16x16xi32>
    %c4_i32 = arith.constant 4 : i32
    %15 = vector.broadcast %c4_i32 : i32 to vector<16x16xi32>
    %16 = arith.subi %14, %15 : vector<16x16xi32>
    %c0_i32_5 = arith.constant 0 : i32
    %c15_i32 = arith.constant 15 : i32
    %17 = vector.broadcast %c0_i32_5 : i32 to vector<16x16xi32>
    %18 = arith.maxsi %17, %16 : vector<16x16xi32>
    %19 = vector.broadcast %c15_i32 : i32 to vector<16x16xi32>
    %20 = arith.minsi %19, %18 : vector<16x16xi32>
    %21 = arith.cmpi eq, %11, %20 : vector<16x16xi32>
    %22 = arith.extui %21 : vector<16x16xi1> to vector<16x16xi32>
    %23 = arith.sitofp %22 : vector<16x16xi32> to vector<16x16xf32>
    %24 = tpu.iota {dimensions = array<i32: 0>} : vector<16x16xi32>
    %25 = tpu.iota {dimensions = array<i32: 1>} : vector<16x16xi32>
    %26 = vector.broadcast %8 : i32 to vector<16x16xi32>
    %27 = arith.addi %25, %26 : vector<16x16xi32>
    %c4_i32_6 = arith.constant 4 : i32
    %28 = vector.broadcast %c4_i32_6 : i32 to vector<16x16xi32>
    %29 = arith.subi %27, %28 : vector<16x16xi32>
    %c0_i32_7 = arith.constant 0 : i32
    %c15_i32_8 = arith.constant 15 : i32
    %30 = vector.broadcast %c0_i32_7 : i32 to vector<16x16xi32>
    %31 = arith.maxsi %30, %29 : vector<16x16xi32>
    %32 = vector.broadcast %c15_i32_8 : i32 to vector<16x16xi32>
    %33 = arith.minsi %32, %31 : vector<16x16xi32>
    %34 = arith.cmpi eq, %24, %33 : vector<16x16xi32>
    %35 = arith.extui %34 : vector<16x16xi1> to vector<16x16xi32>
    %36 = arith.sitofp %35 : vector<16x16xi32> to vector<16x16xf32>
    %37 = vector.shape_cast %10 : vector<4x16x16xf32> to vector<64x16xf32>
    %cst = arith.constant dense<0.000000e+00> : vector<64x16xf32>
    %38 = tpu.matmul %37, %23, %cst {dimension_numbers = #tpu.dot_dimension_numbers<[1], [0], [0], [1], [0, 0, 1, 1], [], []>} : vector<64x16xf32>, vector<16x16xf32>, vector<64x16xf32> -> vector<64x16xf32>
    %39 = vector.shape_cast %38 : vector<64x16xf32> to vector<4x16x16xf32>
    %40 = tpu.transpose %39, [0, 2, 1] : vector<4x16x16xf32> -> vector<4x16x16xf32>
    %41 = vector.shape_cast %40 : vector<4x16x16xf32> to vector<64x16xf32>
    %cst_9 = arith.constant dense<0.000000e+00> : vector<64x16xf32>
    %42 = tpu.matmul %41, %36, %cst_9 {dimension_numbers = #tpu.dot_dimension_numbers<[1], [0], [0], [1], [0, 0, 1, 1], [], []>} : vector<64x16xf32>, vector<16x16xf32>, vector<64x16xf32> -> vector<64x16xf32>
    %43 = vector.shape_cast %42 : vector<64x16xf32> to vector<4x16x16xf32>
    %44 = tpu.transpose %43, [0, 2, 1] : vector<4x16x16xf32> -> vector<4x16x16xf32>
    %c0_10 = arith.constant 0 : index
    %c0_11 = arith.constant 0 : index
    %c0_12 = arith.constant 0 : index
    %c0_13 = arith.constant 0 : index
    %45 = vector.load %arg3[%c0_10, %c0_11, %c0_12, %c0_13] : memref<2x4x16x16xf32, #tpu.memory_space<vmem>>, vector<1x4x16x16xf32>
    %46 = vector.shape_cast %45 : vector<1x4x16x16xf32> to vector<4x16x16xf32>
    %47 = vector.shape_cast %44 : vector<4x16x16xf32> to vector<1x4x16x16xf32>
    tpu.vector_store %arg3[%c0_10, %c0_11, %c0_12, %c0_13], %47 {strides = array<i32>} : memref<2x4x16x16xf32, #tpu.memory_space<vmem>>, vector<1x4x16x16xf32>,
    %c1_i32_14 = arith.constant 1 : i32
    %48 = arith.addi %0, %c1_i32_14 : i32
    %c2_i32_15 = arith.constant 2 : i32
    %49 = arith.muli %c2_i32_15, %48 : i32
    %50 = arith.index_cast %49 : i32 to index
    %51 = memref.load %arg1[%50] : memref<4xi32, #tpu.memory_space<smem>>
    %c2_i32_16 = arith.constant 2 : i32
    %52 = arith.muli %c2_i32_16, %48 : i32
    %c1_i32_17 = arith.constant 1 : i32
    %53 = arith.addi %52, %c1_i32_17 : i32
    %54 = arith.index_cast %53 : i32 to index
    %55 = memref.load %arg1[%54] : memref<4xi32, #tpu.memory_space<smem>>
    %c1 = arith.constant 1 : index
    %c0_18 = arith.constant 0 : index
    %c0_19 = arith.constant 0 : index
    %c0_20 = arith.constant 0 : index
    %56 = vector.load %arg2[%c1, %c0_18, %c0_19, %c0_20] : memref<2x4x16x16xf32, #tpu.memory_space<vmem>>, vector<1x4x16x16xf32>
    %57 = vector.shape_cast %56 : vector<1x4x16x16xf32> to vector<4x16x16xf32>
    %58 = tpu.iota {dimensions = array<i32: 0>} : vector<16x16xi32>
    %59 = tpu.iota {dimensions = array<i32: 1>} : vector<16x16xi32>
    %60 = vector.broadcast %51 : i32 to vector<16x16xi32>
    %61 = arith.addi %59, %60 : vector<16x16xi32>
    %c4_i32_21 = arith.constant 4 : i32
    %62 = vector.broadcast %c4_i32_21 : i32 to vector<16x16xi32>
    %63 = arith.subi %61, %62 : vector<16x16xi32>
    %c0_i32_22 = arith.constant 0 : i32
    %c15_i32_23 = arith.constant 15 : i32
    %64 = vector.broadcast %c0_i32_22 : i32 to vector<16x16xi32>
    %65 = arith.maxsi %64, %63 : vector<16x16xi32>
    %66 = vector.broadcast %c15_i32_23 : i32 to vector<16x16xi32>
    %67 = arith.minsi %66, %65 : vector<16x16xi32>
    %68 = arith.cmpi eq, %58, %67 : vector<16x16xi32>
    %69 = arith.extui %68 : vector<16x16xi1> to vector<16x16xi32>
    %70 = arith.sitofp %69 : vector<16x16xi32> to vector<16x16xf32>
    %71 = tpu.iota {dimensions = array<i32: 0>} : vector<16x16xi32>
    %72 = tpu.iota {dimensions = array<i32: 1>} : vector<16x16xi32>
    %73 = vector.broadcast %55 : i32 to vector<16x16xi32>
    %74 = arith.addi %72, %73 : vector<16x16xi32>
    %c4_i32_24 = arith.constant 4 : i32
    %75 = vector.broadcast %c4_i32_24 : i32 to vector<16x16xi32>
    %76 = arith.subi %74, %75 : vector<16x16xi32>
    %c0_i32_25 = arith.constant 0 : i32
    %c15_i32_26 = arith.constant 15 : i32
    %77 = vector.broadcast %c0_i32_25 : i32 to vector<16x16xi32>
    %78 = arith.maxsi %77, %76 : vector<16x16xi32>
    %79 = vector.broadcast %c15_i32_26 : i32 to vector<16x16xi32>
    %80 = arith.minsi %79, %78 : vector<16x16xi32>
    %81 = arith.cmpi eq, %71, %80 : vector<16x16xi32>
    %82 = arith.extui %81 : vector<16x16xi1> to vector<16x16xi32>
    %83 = arith.sitofp %82 : vector<16x16xi32> to vector<16x16xf32>
    %84 = vector.shape_cast %57 : vector<4x16x16xf32> to vector<64x16xf32>
    %cst_27 = arith.constant dense<0.000000e+00> : vector<64x16xf32>
    %85 = tpu.matmul %84, %70, %cst_27 {dimension_numbers = #tpu.dot_dimension_numbers<[1], [0], [0], [1], [0, 0, 1, 1], [], []>} : vector<64x16xf32>, vector<16x16xf32>, vector<64x16xf32> -> vector<64x16xf32>
    %86 = vector.shape_cast %85 : vector<64x16xf32> to vector<4x16x16xf32>
    %87 = tpu.transpose %86, [0, 2, 1] : vector<4x16x16xf32> -> vector<4x16x16xf32>
    %88 = vector.shape_cast %87 : vector<4x16x16xf32> to vector<64x16xf32>
    %cst_28 = arith.constant dense<0.000000e+00> : vector<64x16xf32>
    %89 = tpu.matmul %88, %83, %cst_28 {dimension_numbers = #tpu.dot_dimension_numbers<[1], [0], [0], [1], [0, 0, 1, 1], [], []>} : vector<64x16xf32>, vector<16x16xf32>, vector<64x16xf32> -> vector<64x16xf32>
    %90 = vector.shape_cast %89 : vector<64x16xf32> to vector<4x16x16xf32>
    %91 = tpu.transpose %90, [0, 2, 1] : vector<4x16x16xf32> -> vector<4x16x16xf32>
    %c1_29 = arith.constant 1 : index
    %c0_30 = arith.constant 0 : index
    %c0_31 = arith.constant 0 : index
    %c0_32 = arith.constant 0 : index
    %92 = vector.load %arg3[%c1_29, %c0_30, %c0_31, %c0_32] : memref<2x4x16x16xf32, #tpu.memory_space<vmem>>, vector<1x4x16x16xf32>
    %93 = vector.shape_cast %92 : vector<1x4x16x16xf32> to vector<4x16x16xf32>
    %94 = vector.shape_cast %91 : vector<4x16x16xf32> to vector<1x4x16x16xf32>
    tpu.vector_store %arg3[%c1_29, %c0_30, %c0_31, %c0_32], %94 {strides = array<i32>} : memref<2x4x16x16xf32, #tpu.memory_space<vmem>>, vector<1x4x16x16xf32>,
    return
  }
  func.func @transform_0(%arg0: i32, %arg1: memref<4xi32, #tpu.memory_space<smem>>) -> (i32, i32, i32, i32) {
    %c0_i32 = arith.constant 0 : i32
    %c0_i32_0 = arith.constant 0 : i32
    %c0_i32_1 = arith.constant 0 : i32
    %c0_i32_2 = arith.constant 0 : i32
    return %arg0, %c0_i32, %c0_i32_0, %c0_i32_1 : i32, i32, i32, i32
  }
  func.func @transform_1(%arg0: i32, %arg1: memref<4xi32, #tpu.memory_space<smem>>) -> (i32, i32, i32, i32) {
    %c0_i32 = arith.constant 0 : i32
    %c0_i32_0 = arith.constant 0 : i32
    %c0_i32_1 = arith.constant 0 : i32
    %c0_i32_2 = arith.constant 0 : i32
    return %arg0, %c0_i32, %c0_i32_0, %c0_i32_1 : i32, i32, i32, i32
  }
}

</mosaic_0001>

<llo_original>
// kernel: tpu_custom_call.1
$region0: #{tpu_custom_call.1}
  #allocation0 [shape = 'u32[]', space=smem, size = 0x4, offset = 0x4, fixed_abs, tag = 'smem constant byte address 0x4 - core index']
  #allocation1 [shape = 'u32[144,128]{1,0:T(1,128)}', space=vmem, size = 0x12000, scoped, tag = 'internal scratch']
  #allocation2 [shape = 's32[1]{0}', space=sflag, size = 0x4, scoped, tag = 'scoped memory for tpu_custom_call.1']
  #allocation3 [shape = 'u8[512]{0}', space=smem, size = 0x200, scoped, tag = 'prefetched SMEM operand 0']
  %s0 = inlined_call_operand.hbm [shape: s32[4], index: 0, kind: input, shape index: {}]
  %s1 = inlined_call_operand.hbm [shape: f32[2,4,16,16], index: 1, kind: input, shape index: {}]
  %s2 = inlined_call_operand.hbm [shape: f32[2,4,16,16], index: 2, kind: output, shape index: {}]
  %s3 = sld [smem:[#allocation0]]
  $region18: #{tpu_custom_call.1} parent=0
    _
  %s5 = ssub.s32 1, %s3
  %s6 = scalar_select 0, %s5, %s3
  %8 = dma.hbm_to_smem %s0, 16, [#allocation3], [#allocation2]
  %9 = dma.done [#allocation2], 16
  %10 = sfence
  $region1: #{tpu_custom_call.1} parent=0
    #allocation4 [shape = 'u8[65536]{0}', space=vmem, size = 0x10000, scoped, tag = 'input window, operand 1, single buffered']
    #allocation5 [shape = 's32[1]{0}', space=sflag, size = 0x4, scoped, tag = 'scoped memory for tpu_custom_call.1']
    #allocation6 [shape = 's32[1]{0}', space=sflag, size = 0x4, scoped, tag = 'scoped memory for tpu_custom_call.1']
    #allocation7 [shape = 'u8[65536]{0}', space=vmem, size = 0x10000, scoped, tag = 'output window, operand 0, single buffered']
    %11 = vsyncpa [#allocation5], 0
    %12 = vsyncpa [#allocation6], 0
    // Predicated region
    $region2: #{tpu_custom_call.1} parent=1 // pred_check
      _
    $region3: #{tpu_custom_call.1} parent=1 // pred_check_branch
      %14 = sbr.rel (0) target = $region5
    $region4: #{tpu_custom_call.1} parent=1 // pred_region
      %s16 = ssub.s32 2048, 2048
      %17 = vsyncadd [#allocation5], %s16
      %s18 = sshll.u32 [#allocation4], 4
      %s19 = int_to_ptr.vmem [resolvable:$true] %s18
      %24 = dma.hbm_to_vmem [thread:$0]  %s1, 2048, %s19, [#allocation5], 128, 128, 8
    $region5: #{tpu_custom_call.1} parent=1 // pred_fallthru
      _
    // Predicated region
    $region6: #{tpu_custom_call.1} parent=1 // pred_check
      _
    $region7: #{tpu_custom_call.1} parent=1 // pred_check_branch
      %26 = sbr.rel (0) target = $region9
    $region8: #{tpu_custom_call.1} parent=1 // pred_region
      %27 = dma.done [#allocation5], 2048
    $region9: #{tpu_custom_call.1} parent=1 // pred_fallthru
      _
    %s28 = smul.u32 0, 2
    %s29 = smul.u32 0, 4
    %s30 = sld [smem:[#allocation3 + %s29]]
    %s31 = sadd.s32 %s29, 1
    %s32 = sld [smem:[#allocation3 + %s31]]
    %v33 = vld [vmem:[#allocation4] sm:$0xff]
    %v34 = vld [vmem:[#allocation4 + $0x8] sm:$0xff]
    %v35 = vld [vmem:[#allocation4 + $0x10] sm:$0xff]
    %v36 = vld [vmem:[#allocation4 + $0x18] sm:$0xff]
    %v37 = vld [vmem:[#allocation4 + $0x20] sm:$0xff]
    %v38 = vld [vmem:[#allocation4 + $0x28] sm:$0xff]
    %v39 = vld [vmem:[#allocation4 + $0x30] sm:$0xff]
    %v40 = vld [vmem:[#allocation4 + $0x38] sm:$0xff]
    %v41 = vlaneseq
    %v42 = vshrl.u32 %v41, 7
    %v43 = vadd.s32 %v42, 8
    %v44 = vlaneseq
    %v45 = vand.u32 %v44, 127
    %v46 = vstv %s30
    %v47 = vadd.s32 %v45, %v46
    %v48 = vsub.s32 %v47, 4
    %vm49 = vcmp.gt.s32.totalorder %v48, 0
    %v50 = vsel %vm49, %v48, 0
    %vm51 = vcmp.lt.s32.totalorder %v50, 15
    %v52 = vsel %vm51, %v50, 15
    %vm53 = vcmp.eq.s32.totalorder %v42, %v52
    %vm54 = vcmp.eq.s32.totalorder %v43, %v52
    %v55 = vsel %vm53, 1, 0
    %v56 = vsel %vm54, 1, 0
    %v57 = vcvt.s32.f32 %v55
    %v58 = vcvt.s32.f32 %v56
    %v59 = vstv %s32
    %v60 = vadd.s32 %v45, %v59
    %v61 = vsub.s32 %v60, 4
    %vm62 = vcmp.gt.s32.totalorder %v61, 0
    %v63 = vsel %vm62, %v61, 0
    %vm64 = vcmp.lt.s32.totalorder %v63, 15
    %v65 = vsel %vm64, %v63, 15
    %vm66 = vcmp.eq.s32.totalorder %v42, %v65
    %vm67 = vcmp.eq.s32.totalorder %v43, %v65
    %v68 = vsel %vm66, 1, 0
    %v69 = vsel %vm67, 1, 0
    %v70 = vcvt.s32.f32 %v68
    %v71 = vcvt.s32.f32 %v69
    %vm72 = vcmask 130048
    %v74 = vsel %vm72, %v33, 0
    %v77 = vsel %vm72, %v34, 0
    %v80 = vsel %vm72, %v35, 0
    %v83 = vsel %vm72, %v36, 0
    %v86 = vsel %vm72, %v37, 0
    %v89 = vsel %vm72, %v38, 0
    %v92 = vsel %vm72, %v39, 0
    %v95 = vsel %vm72, %v40, 0
    %97 = vmatprep.subr.mxu0 0.0
    %98 = vmatpush1.msra.mxu0 %v57
    %99 = vmatprep.subr.mxu0 0.0
    %100 = vmatpush1.msra.mxu0 %v58
    %101 = vmatprep.subr.mxu0 0.0
    %102 = vmatpush1.msra.mxu0 0.0
    %103 = vmatprep.subr.mxu0 0.0
    %104 = vmatpush1.msra.mxu0 0.0
    %105 = vmatprep.subr.mxu0 0.0
    %106 = vmatpush1.msra.mxu0 0.0
    %107 = vmatprep.subr.mxu0 0.0
    %108 = vmatpush1.msra.mxu0 0.0
    %109 = vmatprep.subr.mxu0 0.0
    %110 = vmatpush1.msra.mxu0 0.0
    %111 = vmatprep.subr.mxu0 0.0
    %112 = vmatpush1.msra.mxu0 0.0
    %113 = vmatprep.subr.mxu0 0.0
    %114 = vmatpush1.msra.mxu0 0.0
    %115 = vmatprep.subr.mxu0 0.0
    %116 = vmatpush1.msra.mxu0 0.0
    %117 = vmatprep.subr.mxu0 0.0
    %118 = vmatpush1.msra.mxu0 0.0
    %119 = vmatprep.subr.mxu0 0.0
    %120 = vmatpush1.msra.mxu0 0.0
    %121 = vmatprep.subr.mxu0 0.0
    %122 = vmatpush1.msra.mxu0 0.0
    %123 = vmatprep.subr.mxu0 0.0
    %124 = vmatpush1.msra.mxu0 0.0
    %125 = vmatprep.subr.mxu0 0.0
    %126 = vmatpush1.msra.mxu0 0.0
    %127 = vmatprep.subr.mxu0 0.0
    %128 = vmatpush1.msra.mxu0 0.0
    %129 = vmatprep.subr.mxu0 0.0
    %130 = vmatpush1.msra.mxu0 0.0
    %131 = vmatprep.subr.mxu0 0.0
    %132 = vmatpush1.msra.mxu0 0.0
    %133 = vmatprep.subr.mxu0 0.0
    %134 = vmatpush1.msra.mxu0 0.0
    %135 = vmatprep.subr.mxu0 0.0
    %136 = vmatpush1.msra.mxu0 0.0
    %137 = vmatprep.subr.mxu0 0.0
    %138 = vmatpush1.msra.mxu0 0.0
    %139 = vmatprep.subr.mxu0 0.0
    %140 = vmatpush1.msra.mxu0 0.0
    %141 = vmatprep.subr.mxu0 0.0
    %142 = vmatpush1.msra.mxu0 0.0
    %143 = vmatprep.subr.mxu0 0.0
    %144 = vmatpush1.msra.mxu0 0.0
    %145 = vmatprep.subr.mxu0 0.0
    %146 = vmatpush1.msra.mxu0 0.0
    %147 = vmatprep.subr.mxu0 0.0
    %148 = vmatpush1.msra.mxu0 0.0
    %149 = vmatprep.subr.mxu0 0.0
    %150 = vmatpush1.msra.mxu0 0.0
    %151 = vmatprep.subr.mxu0 0.0
    %152 = vmatpush1.msra.mxu0 0.0
    %153 = vmatprep.subr.mxu0 0.0
    %154 = vmatpush1.msra.mxu0 0.0
    %155 = vmatprep.subr.mxu0 0.0
    %156 = vmatpush1.msra.mxu0 0.0
    %157 = vmatprep.subr.mxu0 0.0
    %158 = vmatpush1.msra.mxu0 0.0
    %159 = vmatprep.subr.mxu0 0.0
    %160 = vmatpush1.msra.mxu0 0.0
    %161 = vmatprep.mubr.f32.mxu0 0.0
    %162 = vmatmul.mubr.f32.gmra.mrb[0].mxu0 %v74
    %v163 = vpop.f32.mrb[0].mxu0
    %v164 = vadd.f32 0.0, %v163
    %v165 = vpop.f32.mrb[0].mxu0
    %166 = vmatprep.mubr.f32.mxu0 0.0
    %167 = vmatmul.mubr.f32.gmra.mrb[0].mxu0 %v77
    %v168 = vpop.f32.mrb[0].mxu0
    %v169 = vadd.f32 0.0, %v168
    %v170 = vpop.f32.mrb[0].mxu0
    %171 = vmatprep.mubr.f32.mxu0 0.0
    %172 = vmatmul.mubr.f32.gmra.mrb[0].mxu0 %v80
    %v173 = vpop.f32.mrb[0].mxu0
    %v174 = vadd.f32 0.0, %v173
    %v175 = vpop.f32.mrb[0].mxu0
    %176 = vmatprep.mubr.f32.mxu0 0.0
    %177 = vmatmul.mubr.f32.gmra.mrb[0].mxu0 %v83
    %v178 = vpop.f32.mrb[0].mxu0
    %v179 = vadd.f32 0.0, %v178
    %v180 = vpop.f32.mrb[0].mxu0
    %181 = vmatprep.mubr.f32.mxu0 0.0
    %182 = vmatmul.mubr.f32.gmra.mrb[0].mxu0 %v86
    %v183 = vpop.f32.mrb[0].mxu0
    %v184 = vadd.f32 0.0, %v183
    %v185 = vpop.f32.mrb[0].mxu0
    %186 = vmatprep.mubr.f32.mxu0 0.0
    %187 = vmatmul.mubr.f32.gmra.mrb[0].mxu0 %v89
    %v188 = vpop.f32.mrb[0].mxu0
    %v189 = vadd.f32 0.0, %v188
    %v190 = vpop.f32.mrb[0].mxu0
    %191 = vmatprep.mubr.f32.mxu0 0.0
    %192 = vmatmul.mubr.f32.gmra.mrb[0].mxu0 %v92
    %v193 = vpop.f32.mrb[0].mxu0
    %v194 = vadd.f32 0.0, %v193
    %v195 = vpop.f32.mrb[0].mxu0
    %196 = vmatprep.mubr.f32.mxu0 0.0
    %197 = vmatmul.mubr.f32.gmra.mrb[0].mxu0 %v95
    %v198 = vpop.f32.mrb[0].mxu0
    %v199 = vadd.f32 0.0, %v198
    %v200 = vpop.f32.mrb[0].mxu0
    %201 = vdwg.mxu0
    %202 = vxpose.xlu0.b32.start [1/16] %v164, 128
    %203 = vxpose.xlu0.b32.cont [2/16] %v169, 128
    %204 = vxpose.xlu0.b32.cont [3/16] 0.0, 128
    %205 = vxpose.xlu0.b32.cont [4/16] 0.0, 128
    %206 = vxpose.xlu0.b32.cont [5/16] 0.0, 128
    %207 = vxpose.xlu0.b32.cont [6/16] 0.0, 128
    %208 = vxpose.xlu0.b32.cont [7/16] 0.0, 128
    %209 = vxpose.xlu0.b32.cont [8/16] 0.0, 128
    %210 = vxpose.xlu0.b32.cont [9/16] 0.0, 128
    %211 = vxpose.xlu0.b32.cont [10/16] 0.0, 128
    %212 = vxpose.xlu0.b32.cont [11/16] 0.0, 128
    %213 = vxpose.xlu0.b32.cont [12/16] 0.0, 128
    %214 = vxpose.xlu0.b32.cont [13/16] 0.0, 128
    %215 = vxpose.xlu0.b32.cont [14/16] 0.0, 128
    %216 = vxpose.xlu0.b32.cont [15/16] 0.0, 128
    %217 = vxpose.xlu0.b32.end [16/16] 0.0, 128
    %v218 = vpop.trf.xlu0
    %v219 = vpop.trf.xlu0
    %v220 = vpop.trf.xlu0
    %v221 = vpop.trf.xlu0
    %v222 = vpop.trf.xlu0
    %v223 = vpop.trf.xlu0
    %v224 = vpop.trf.xlu0
    %v225 = vpop.trf.xlu0
    %v226 = vpop.trf.xlu0
    %v227 = vpop.trf.xlu0
    %v228 = vpop.trf.xlu0
    %v229 = vpop.trf.xlu0
    %v230 = vpop.trf.xlu0
    %v231 = vpop.trf.xlu0
    %v232 = vpop.trf.xlu0
    %v233 = vpop.trf.xlu0
    %234 = vxpose.xlu0.b32.start [1/16] %v174, 128
    %235 = vxpose.xlu0.b32.cont [2/16] %v179, 128
    %236 = vxpose.xlu0.b32.cont [3/16] 0.0, 128
    %237 = vxpose.xlu0.b32.cont [4/16] 0.0, 128
    %238 = vxpose.xlu0.b32.cont [5/16] 0.0, 128
    %239 = vxpose.xlu0.b32.cont [6/16] 0.0, 128
    %240 = vxpose.xlu0.b32.cont [7/16] 0.0, 128
    %241 = vxpose.xlu0.b32.cont [8/16] 0.0, 128
    %242 = vxpose.xlu0.b32.cont [9/16] 0.0, 128
    %243 = vxpose.xlu0.b32.cont [10/16] 0.0, 128
    %244 = vxpose.xlu0.b32.cont [11/16] 0.0, 128
    %245 = vxpose.xlu0.b32.cont [12/16] 0.0, 128
    %246 = vxpose.xlu0.b32.cont [13/16] 0.0, 128
    %247 = vxpose.xlu0.b32.cont [14/16] 0.0, 128
    %248 = vxpose.xlu0.b32.cont [15/16] 0.0, 128
    %249 = vxpose.xlu0.b32.end [16/16] 0.0, 128
    %v250 = vpop.trf.xlu0
    %v251 = vpop.trf.xlu0
    %v252 = vpop.trf.xlu0
    %v253 = vpop.trf.xlu0
    %v254 = vpop.trf.xlu0
    %v255 = vpop.trf.xlu0
    %v256 = vpop.trf.xlu0
    %v257 = vpop.trf.xlu0
    %v258 = vpop.trf.xlu0
    %v259 = vpop.trf.xlu0
    %v260 = vpop.trf.xlu0
    %v261 = vpop.trf.xlu0
    %v262 = vpop.trf.xlu0
    %v263 = vpop.trf.xlu0
    %v264 = vpop.trf.xlu0
    %v265 = vpop.trf.xlu0
    %266 = vxpose.xlu0.b32.start [1/16] %v184, 128
    %267 = vxpose.xlu0.b32.cont [2/16] %v189, 128
    %268 = vxpose.xlu0.b32.cont [3/16] 0.0, 128
    %269 = vxpose.xlu0.b32.cont [4/16] 0.0, 128
    %270 = vxpose.xlu0.b32.cont [5/16] 0.0, 128
    %271 = vxpose.xlu0.b32.cont [6/16] 0.0, 128
    %272 = vxpose.xlu0.b32.cont [7/16] 0.0, 128
    %273 = vxpose.xlu0.b32.cont [8/16] 0.0, 128
    %274 = vxpose.xlu0.b32.cont [9/16] 0.0, 128
    %275 = vxpose.xlu0.b32.cont [10/16] 0.0, 128
    %276 = vxpose.xlu0.b32.cont [11/16] 0.0, 128
    %277 = vxpose.xlu0.b32.cont [12/16] 0.0, 128
    %278 = vxpose.xlu0.b32.cont [13/16] 0.0, 128
    %279 = vxpose.xlu0.b32.cont [14/16] 0.0, 128
    %280 = vxpose.xlu0.b32.cont [15/16] 0.0, 128
    %281 = vxpose.xlu0.b32.end [16/16] 0.0, 128
    %v282 = vpop.trf.xlu0
    %v283 = vpop.trf.xlu0
    %v284 = vpop.trf.xlu0
    %v285 = vpop.trf.xlu0
    %v286 = vpop.trf.xlu0
    %v287 = vpop.trf.xlu0
    %v288 = vpop.trf.xlu0
    %v289 = vpop.trf.xlu0
    %v290 = vpop.trf.xlu0
    %v291 = vpop.trf.xlu0
    %v292 = vpop.trf.xlu0
    %v293 = vpop.trf.xlu0
    %v294 = vpop.trf.xlu0
    %v295 = vpop.trf.xlu0
    %v296 = vpop.trf.xlu0
    %v297 = vpop.trf.xlu0
    %298 = vxpose.xlu0.b32.start [1/16] %v194, 128
    %299 = vxpose.xlu0.b32.cont [2/16] %v199, 128
    %300 = vxpose.xlu0.b32.cont [3/16] 0.0, 128
    %301 = vxpose.xlu0.b32.cont [4/16] 0.0, 128
    %302 = vxpose.xlu0.b32.cont [5/16] 0.0, 128
    %303 = vxpose.xlu0.b32.cont [6/16] 0.0, 128
    %304 = vxpose.xlu0.b32.cont [7/16] 0.0, 128
    %305 = vxpose.xlu0.b32.cont [8/16] 0.0, 128
    %306 = vxpose.xlu0.b32.cont [9/16] 0.0, 128
    %307 = vxpose.xlu0.b32.cont [10/16] 0.0, 128
    %308 = vxpose.xlu0.b32.cont [11/16] 0.0, 128
    %309 = vxpose.xlu0.b32.cont [12/16] 0.0, 128
    %310 = vxpose.xlu0.b32.cont [13/16] 0.0, 128
    %311 = vxpose.xlu0.b32.cont [14/16] 0.0, 128
    %312 = vxpose.xlu0.b32.cont [15/16] 0.0, 128
    %313 = vxpose.xlu0.b32.end [16/16] 0.0, 128
    %v314 = vpop.trf.xlu0
    %v315 = vpop.trf.xlu0
    %v316 = vpop.trf.xlu0
    %v317 = vpop.trf.xlu0
    %v318 = vpop.trf.xlu0
    %v319 = vpop.trf.xlu0
    %v320 = vpop.trf.xlu0
    %v321 = vpop.trf.xlu0
    %v322 = vpop.trf.xlu0
    %v323 = vpop.trf.xlu0
    %v324 = vpop.trf.xlu0
    %v325 = vpop.trf.xlu0
    %v326 = vpop.trf.xlu0
    %v327 = vpop.trf.xlu0
    %v328 = vpop.trf.xlu0
    %v329 = vpop.trf.xlu0
    %v331 = vsel %vm72, %v218, 0
    %v334 = vsel %vm72, %v219, 0
    %v337 = vsel %vm72, %v250, 0
    %v340 = vsel %vm72, %v251, 0
    %v343 = vsel %vm72, %v282, 0
    %v346 = vsel %vm72, %v283, 0
    %v349 = vsel %vm72, %v314, 0
    %v352 = vsel %vm72, %v315, 0
    %354 = vmatprep.subr.mxu0 0.0
    %355 = vmatpush1.msra.mxu0 %v70
    %356 = vmatprep.subr.mxu0 0.0
    %357 = vmatpush1.msra.mxu0 %v71
    %358 = vmatprep.subr.mxu0 0.0
    %359 = vmatpush1.msra.mxu0 0.0
    %360 = vmatprep.subr.mxu0 0.0
    %361 = vmatpush1.msra.mxu0 0.0
    %362 = vmatprep.subr.mxu0 0.0
    %363 = vmatpush1.msra.mxu0 0.0
    %364 = vmatprep.subr.mxu0 0.0
    %365 = vmatpush1.msra.mxu0 0.0
    %366 = vmatprep.subr.mxu0 0.0
    %367 = vmatpush1.msra.mxu0 0.0
    %368 = vmatprep.subr.mxu0 0.0
    %369 = vmatpush1.msra.mxu0 0.0
    %370 = vmatprep.subr.mxu0 0.0
    %371 = vmatpush1.msra.mxu0 0.0
    %372 = vmatprep.subr.mxu0 0.0
    %373 = vmatpush1.msra.mxu0 0.0
    %374 = vmatprep.subr.mxu0 0.0
    %375 = vmatpush1.msra.mxu0 0.0
    %376 = vmatprep.subr.mxu0 0.0
    %377 = vmatpush1.msra.mxu0 0.0
    %378 = vmatprep.subr.mxu0 0.0
    %379 = vmatpush1.msra.mxu0 0.0
    %380 = vmatprep.subr.mxu0 0.0
    %381 = vmatpush1.msra.mxu0 0.0
    %382 = vmatprep.subr.mxu0 0.0
    %383 = vmatpush1.msra.mxu0 0.0
    %384 = vmatprep.subr.mxu0 0.0
    %385 = vmatpush1.msra.mxu0 0.0
    %386 = vmatprep.subr.mxu0 0.0
    %387 = vmatpush1.msra.mxu0 0.0
    %388 = vmatprep.subr.mxu0 0.0
    %389 = vmatpush1.msra.mxu0 0.0
    %390 = vmatprep.subr.mxu0 0.0
    %391 = vmatpush1.msra.mxu0 0.0
    %392 = vmatprep.subr.mxu0 0.0
    %393 = vmatpush1.msra.mxu0 0.0
    %394 = vmatprep.subr.mxu0 0.0
    %395 = vmatpush1.msra.mxu0 0.0
    %396 = vmatprep.subr.mxu0 0.0
    %397 = vmatpush1.msra.mxu0 0.0
    %398 = vmatprep.subr.mxu0 0.0
    %399 = vmatpush1.msra.mxu0 0.0
    %400 = vmatprep.subr.mxu0 0.0
    %401 = vmatpush1.msra.mxu0 0.0
    %402 = vmatprep.subr.mxu0 0.0
    %403 = vmatpush1.msra.mxu0 0.0
    %404 = vmatprep.subr.mxu0 0.0
    %405 = vmatpush1.msra.mxu0 0.0
    %406 = vmatprep.subr.mxu0 0.0
    %407 = vmatpush1.msra.mxu0 0.0
    %408 = vmatprep.subr.mxu0 0.0
    %409 = vmatpush1.msra.mxu0 0.0
    %410 = vmatprep.subr.mxu0 0.0
    %411 = vmatpush1.msra.mxu0 0.0
    %412 = vmatprep.subr.mxu0 0.0
    %413 = vmatpush1.msra.mxu0 0.0
    %414 = vmatprep.subr.mxu0 0.0
    %415 = vmatpush1.msra.mxu0 0.0
    %416 = vmatprep.subr.mxu0 0.0
    %417 = vmatpush1.msra.mxu0 0.0
    %418 = vmatprep.mubr.f32.mxu0 0.0
    %419 = vmatmul.mubr.f32.gmra.mrb[0].mxu0 %v331
    %v420 = vpop.f32.mrb[0].mxu0
    %v421 = vadd.f32 0.0, %v420
    %v422 = vpop.f32.mrb[0].mxu0
    %423 = vmatprep.mubr.f32.mxu0 0.0
    %424 = vmatmul.mubr.f32.gmra.mrb[0].mxu0 %v334
    %v425 = vpop.f32.mrb[0].mxu0
    %v426 = vadd.f32 0.0, %v425
    %v427 = vpop.f32.mrb[0].mxu0
    %428 = vmatprep.mubr.f32.mxu0 0.0
    %429 = vmatmul.mubr.f32.gmra.mrb[0].mxu0 %v337
    %v430 = vpop.f32.mrb[0].mxu0
    %v431 = vadd.f32 0.0, %v430
    %v432 = vpop.f32.mrb[0].mxu0
    %433 = vmatprep.mubr.f32.mxu0 0.0
    %434 = vmatmul.mubr.f32.gmra.mrb[0].mxu0 %v340
    %v435 = vpop.f32.mrb[0].mxu0
    %v436 = vadd.f32 0.0, %v435
    %v437 = vpop.f32.mrb[0].mxu0
    %438 = vmatprep.mubr.f32.mxu0 0.0
    %439 = vmatmul.mubr.f32.gmra.mrb[0].mxu0 %v343
    %v440 = vpop.f32.mrb[0].mxu0
    %v441 = vadd.f32 0.0, %v440
    %v442 = vpop.f32.mrb[0].mxu0
    %443 = vmatprep.mubr.f32.mxu0 0.0
    %444 = vmatmul.mubr.f32.gmra.mrb[0].mxu0 %v346
    %v445 = vpop.f32.mrb[0].mxu0
    %v446 = vadd.f32 0.0, %v445
    %v447 = vpop.f32.mrb[0].mxu0
    %448 = vmatprep.mubr.f32.mxu0 0.0
    %449 = vmatmul.mubr.f32.gmra.mrb[0].mxu0 %v349
    %v450 = vpop.f32.mrb[0].mxu0
    %v451 = vadd.f32 0.0, %v450
    %v452 = vpop.f32.mrb[0].mxu0
    %453 = vmatprep.mubr.f32.mxu0 0.0
    %454 = vmatmul.mubr.f32.gmra.mrb[0].mxu0 %v352
    %v455 = vpop.f32.mrb[0].mxu0
    %v456 = vadd.f32 0.0, %v455
    %v457 = vpop.f32.mrb[0].mxu0
    %458 = vdwg.mxu0
    %459 = vxpose.xlu0.b32.start [1/16] %v421, 128
    %460 = vxpose.xlu0.b32.cont [2/16] %v426, 128
    %461 = vxpose.xlu0.b32.cont [3/16] 0.0, 128
    %462 = vxpose.xlu0.b32.cont [4/16] 0.0, 128
    %463 = vxpose.xlu0.b32.cont [5/16] 0.0, 128
    %464 = vxpose.xlu0.b32.cont [6/16] 0.0, 128
    %465 = vxpose.xlu0.b32.cont [7/16] 0.0, 128
    %466 = vxpose.xlu0.b32.cont [8/16] 0.0, 128
    %467 = vxpose.xlu0.b32.cont [9/16] 0.0, 128
    %468 = vxpose.xlu0.b32.cont [10/16] 0.0, 128
    %469 = vxpose.xlu0.b32.cont [11/16] 0.0, 128
    %470 = vxpose.xlu0.b32.cont [12/16] 0.0, 128
    %471 = vxpose.xlu0.b32.cont [13/16] 0.0, 128
    %472 = vxpose.xlu0.b32.cont [14/16] 0.0, 128
    %473 = vxpose.xlu0.b32.cont [15/16] 0.0, 128
    %474 = vxpose.xlu0.b32.end [16/16] 0.0, 128
    %v475 = vpop.trf.xlu0
    %v476 = vpop.trf.xlu0
    %v477 = vpop.trf.xlu0
    %v478 = vpop.trf.xlu0
    %v479 = vpop.trf.xlu0
    %v480 = vpop.trf.xlu0
    %v481 = vpop.trf.xlu0
    %v482 = vpop.trf.xlu0
    %v483 = vpop.trf.xlu0
    %v484 = vpop.trf.xlu0
    %v485 = vpop.trf.xlu0
    %v486 = vpop.trf.xlu0
    %v487 = vpop.trf.xlu0
    %v488 = vpop.trf.xlu0
    %v489 = vpop.trf.xlu0
    %v490 = vpop.trf.xlu0
    %491 = vxpose.xlu0.b32.start [1/16] %v431, 128
    %492 = vxpose.xlu0.b32.cont [2/16] %v436, 128
    %493 = vxpose.xlu0.b32.cont [3/16] 0.0, 128
    %494 = vxpose.xlu0.b32.cont [4/16] 0.0, 128
    %495 = vxpose.xlu0.b32.cont [5/16] 0.0, 128
    %496 = vxpose.xlu0.b32.cont [6/16] 0.0, 128
    %497 = vxpose.xlu0.b32.cont [7/16] 0.0, 128
    %498 = vxpose.xlu0.b32.cont [8/16] 0.0, 128
    %499 = vxpose.xlu0.b32.cont [9/16] 0.0, 128
    %500 = vxpose.xlu0.b32.cont [10/16] 0.0, 128
    %501 = vxpose.xlu0.b32.cont [11/16] 0.0, 128
    %502 = vxpose.xlu0.b32.cont [12/16] 0.0, 128
    %503 = vxpose.xlu0.b32.cont [13/16] 0.0, 128
    %504 = vxpose.xlu0.b32.cont [14/16] 0.0, 128
    %505 = vxpose.xlu0.b32.cont [15/16] 0.0, 128
    %506 = vxpose.xlu0.b32.end [16/16] 0.0, 128
    %v507 = vpop.trf.xlu0
    %v508 = vpop.trf.xlu0
    %v509 = vpop.trf.xlu0
    %v510 = vpop.trf.xlu0
    %v511 = vpop.trf.xlu0
    %v512 = vpop.trf.xlu0
    %v513 = vpop.trf.xlu0
    %v514 = vpop.trf.xlu0
    %v515 = vpop.trf.xlu0
    %v516 = vpop.trf.xlu0
    %v517 = vpop.trf.xlu0
    %v518 = vpop.trf.xlu0
    %v519 = vpop.trf.xlu0
    %v520 = vpop.trf.xlu0
    %v521 = vpop.trf.xlu0
    %v522 = vpop.trf.xlu0
    %523 = vxpose.xlu0.b32.start [1/16] %v441, 128
    %524 = vxpose.xlu0.b32.cont [2/16] %v446, 128
    %525 = vxpose.xlu0.b32.cont [3/16] 0.0, 128
    %526 = vxpose.xlu0.b32.cont [4/16] 0.0, 128
    %527 = vxpose.xlu0.b32.cont [5/16] 0.0, 128
    %528 = vxpose.xlu0.b32.cont [6/16] 0.0, 128
    %529 = vxpose.xlu0.b32.cont [7/16] 0.0, 128
    %530 = vxpose.xlu0.b32.cont [8/16] 0.0, 128
    %531 = vxpose.xlu0.b32.cont [9/16] 0.0, 128
    %532 = vxpose.xlu0.b32.cont [10/16] 0.0, 128
    %533 = vxpose.xlu0.b32.cont [11/16] 0.0, 128
    %534 = vxpose.xlu0.b32.cont [12/16] 0.0, 128
    %535 = vxpose.xlu0.b32.cont [13/16] 0.0, 128
    %536 = vxpose.xlu0.b32.cont [14/16] 0.0, 128
    %537 = vxpose.xlu0.b32.cont [15/16] 0.0, 128
    %538 = vxpose.xlu0.b32.end [16/16] 0.0, 128
    %v539 = vpop.trf.xlu0
    %v540 = vpop.trf.xlu0
    %v541 = vpop.trf.xlu0
    %v542 = vpop.trf.xlu0
    %v543 = vpop.trf.xlu0
    %v544 = vpop.trf.xlu0
    %v545 = vpop.trf.xlu0
    %v546 = vpop.trf.xlu0
    %v547 = vpop.trf.xlu0
    %v548 = vpop.trf.xlu0
    %v549 = vpop.trf.xlu0
    %v550 = vpop.trf.xlu0
    %v551 = vpop.trf.xlu0
    %v552 = vpop.trf.xlu0
    %v553 = vpop.trf.xlu0
    %v554 = vpop.trf.xlu0
    %555 = vxpose.xlu0.b32.start [1/16] %v451, 128
    %556 = vxpose.xlu0.b32.cont [2/16] %v456, 128
    %557 = vxpose.xlu0.b32.cont [3/16] 0.0, 128
    %558 = vxpose.xlu0.b32.cont [4/16] 0.0, 128
    %559 = vxpose.xlu0.b32.cont [5/16] 0.0, 128
    %560 = vxpose.xlu0.b32.cont [6/16] 0.0, 128
    %561 = vxpose.xlu0.b32.cont [7/16] 0.0, 128
    %562 = vxpose.xlu0.b32.cont [8/16] 0.0, 128
    %563 = vxpose.xlu0.b32.cont [9/16] 0.0, 128
    %564 = vxpose.xlu0.b32.cont [10/16] 0.0, 128
    %565 = vxpose.xlu0.b32.cont [11/16] 0.0, 128
    %566 = vxpose.xlu0.b32.cont [12/16] 0.0, 128
    %567 = vxpose.xlu0.b32.cont [13/16] 0.0, 128
    %568 = vxpose.xlu0.b32.cont [14/16] 0.0, 128
    %569 = vxpose.xlu0.b32.cont [15/16] 0.0, 128
    %570 = vxpose.xlu0.b32.end [16/16] 0.0, 128
    %v571 = vpop.trf.xlu0
    %v572 = vpop.trf.xlu0
    %v573 = vpop.trf.xlu0
    %v574 = vpop.trf.xlu0
    %v575 = vpop.trf.xlu0
    %v576 = vpop.trf.xlu0
    %v577 = vpop.trf.xlu0
    %v578 = vpop.trf.xlu0
    %v579 = vpop.trf.xlu0
    %v580 = vpop.trf.xlu0
    %v581 = vpop.trf.xlu0
    %v582 = vpop.trf.xlu0
    %v583 = vpop.trf.xlu0
    %v584 = vpop.trf.xlu0
    %v585 = vpop.trf.xlu0
    %v586 = vpop.trf.xlu0
    %587 = vst.msk [vmem:[#allocation7] sm:$0xff] %vm72, %v475
    %588 = vst.msk [vmem:[#allocation7 + $0x8] sm:$0xff] %vm72, %v476
    %589 = vst.msk [vmem:[#allocation7 + $0x10] sm:$0xff] %vm72, %v507
    %590 = vst.msk [vmem:[#allocation7 + $0x18] sm:$0xff] %vm72, %v508
    %591 = vst.msk [vmem:[#allocation7 + $0x20] sm:$0xff] %vm72, %v539
    %592 = vst.msk [vmem:[#allocation7 + $0x28] sm:$0xff] %vm72, %v540
    %593 = vst.msk [vmem:[#allocation7 + $0x30] sm:$0xff] %vm72, %v571
    %594 = vst.msk [vmem:[#allocation7 + $0x38] sm:$0xff] %vm72, %v572
    %s595 = sadd.s32 %s28, 1
    %s596 = smul.u32 %s595, 2
    %s597 = sld [smem:[#allocation3 + %s596]]
    %s598 = sadd.s32 %s596, 1
    %s599 = sld [smem:[#allocation3 + %s598]]
    %s600 = scalar_lea.vmem [#allocation4], 64
    %v601 = vld [vmem:[%s600] sm:$0xff]
    %v602 = vld [vmem:[%s600 + $0x8] sm:$0xff]
    %v603 = vld [vmem:[%s600 + $0x10] sm:$0xff]
    %v604 = vld [vmem:[%s600 + $0x18] sm:$0xff]
    %v605 = vld [vmem:[%s600 + $0x20] sm:$0xff]
    %v606 = vld [vmem:[%s600 + $0x28] sm:$0xff]
    %v607 = vld [vmem:[%s600 + $0x30] sm:$0xff]
    %v608 = vld [vmem:[%s600 + $0x38] sm:$0xff]
    %v609 = vstv %s597
    %v610 = vadd.s32 %v45, %v609
    %v611 = vsub.s32 %v610, 4
    %vm612 = vcmp.gt.s32.totalorder %v611, 0
    %v613 = vsel %vm612, %v611, 0
    %vm614 = vcmp.lt.s32.totalorder %v613, 15
    %v615 = vsel %vm614, %v613, 15
    %vm616 = vcmp.eq.s32.totalorder %v42, %v615
    %vm617 = vcmp.eq.s32.totalorder %v43, %v615
    %v618 = vsel %vm616, 1, 0
    %v619 = vsel %vm617, 1, 0
    %v620 = vcvt.s32.f32 %v618
    %v621 = vcvt.s32.f32 %v619
    %v622 = vstv %s599
    %v623 = vadd.s32 %v45, %v622
    %v624 = vsub.s32 %v623, 4
    %vm625 = vcmp.gt.s32.totalorder %v624, 0
    %v626 = vsel %vm625, %v624, 0
    %vm627 = vcmp.lt.s32.totalorder %v626, 15
    %v628 = vsel %vm627, %v626, 15
    %vm629 = vcmp.eq.s32.totalorder %v42, %v628
    %vm630 = vcmp.eq.s32.totalorder %v43, %v628
    %v631 = vsel %vm629, 1, 0
    %v632 = vsel %vm630, 1, 0
    %v633 = vcvt.s32.f32 %v631
    %v634 = vcvt.s32.f32 %v632
    %v636 = vsel %vm72, %v601, 0
    %v639 = vsel %vm72, %v602, 0
    %v642 = vsel %vm72, %v603, 0
    %v645 = vsel %vm72, %v604, 0
    %v648 = vsel %vm72, %v605, 0
    %v651 = vsel %vm72, %v606, 0
    %v654 = vsel %vm72, %v607, 0
    %v657 = vsel %vm72, %v608, 0
    %659 = vmatprep.subr.mxu0 0.0
    %660 = vmatpush1.msra.mxu0 %v620
    %661 = vmatprep.subr.mxu0 0.0
    %662 = vmatpush1.msra.mxu0 %v621
    %663 = vmatprep.subr.mxu0 0.0
    %664 = vmatpush1.msra.mxu0 0.0
    %665 = vmatprep.subr.mxu0 0.0
    %666 = vmatpush1.msra.mxu0 0.0
    %667 = vmatprep.subr.mxu0 0.0
    %668 = vmatpush1.msra.mxu0 0.0
    %669 = vmatprep.subr.mxu0 0.0
    %670 = vmatpush1.msra.mxu0 0.0
    %671 = vmatprep.subr.mxu0 0.0
    %672 = vmatpush1.msra.mxu0 0.0
    %673 = vmatprep.subr.mxu0 0.0
    %674 = vmatpush1.msra.mxu0 0.0
    %675 = vmatprep.subr.mxu0 0.0
    %676 = vmatpush1.msra.mxu0 0.0
    %677 = vmatprep.subr.mxu0 0.0
    %678 = vmatpush1.msra.mxu0 0.0
    %679 = vmatprep.subr.mxu0 0.0
    %680 = vmatpush1.msra.mxu0 0.0
    %681 = vmatprep.subr.mxu0 0.0
    %682 = vmatpush1.msra.mxu0 0.0
    %683 = vmatprep.subr.mxu0 0.0
    %684 = vmatpush1.msra.mxu0 0.0
    %685 = vmatprep.subr.mxu0 0.0
    %686 = vmatpush1.msra.mxu0 0.0
    %687 = vmatprep.subr.mxu0 0.0
    %688 = vmatpush1.msra.mxu0 0.0
    %689 = vmatprep.subr.mxu0 0.0
    %690 = vmatpush1.msra.mxu0 0.0
    %691 = vmatprep.subr.mxu0 0.0
    %692 = vmatpush1.msra.mxu0 0.0
    %693 = vmatprep.subr.mxu0 0.0
    %694 = vmatpush1.msra.mxu0 0.0
    %695 = vmatprep.subr.mxu0 0.0
    %696 = vmatpush1.msra.mxu0 0.0
    %697 = vmatprep.subr.mxu0 0.0
    %698 = vmatpush1.msra.mxu0 0.0
    %699 = vmatprep.subr.mxu0 0.0
    %700 = vmatpush1.msra.mxu0 0.0
    %701 = vmatprep.subr.mxu0 0.0
    %702 = vmatpush1.msra.mxu0 0.0
    %703 = vmatprep.subr.mxu0 0.0
    %704 = vmatpush1.msra.mxu0 0.0
    %705 = vmatprep.subr.mxu0 0.0
    %706 = vmatpush1.msra.mxu0 0.0
    %707 = vmatprep.subr.mxu0 0.0
    %708 = vmatpush1.msra.mxu0 0.0
    %709 = vmatprep.subr.mxu0 0.0
    %710 = vmatpush1.msra.mxu0 0.0
    %711 = vmatprep.subr.mxu0 0.0
    %712 = vmatpush1.msra.mxu0 0.0
    %713 = vmatprep.subr.mxu0 0.0
    %714 = vmatpush1.msra.mxu0 0.0
    %715 = vmatprep.subr.mxu0 0.0
    %716 = vmatpush1.msra.mxu0 0.0
    %717 = vmatprep.subr.mxu0 0.0
    %718 = vmatpush1.msra.mxu0 0.0
    %719 = vmatprep.subr.mxu0 0.0
    %720 = vmatpush1.msra.mxu0 0.0
    %721 = vmatprep.subr.mxu0 0.0
    %722 = vmatpush1.msra.mxu0 0.0
    %723 = vmatprep.mubr.f32.mxu0 0.0
    %724 = vmatmul.mubr.f32.gmra.mrb[0].mxu0 %v636
    %v725 = vpop.f32.mrb[0].mxu0
    %v726 = vadd.f32 0.0, %v725
    %v727 = vpop.f32.mrb[0].mxu0
    %728 = vmatprep.mubr.f32.mxu0 0.0
    %729 = vmatmul.mubr.f32.gmra.mrb[0].mxu0 %v639
    %v730 = vpop.f32.mrb[0].mxu0
    %v731 = vadd.f32 0.0, %v730
    %v732 = vpop.f32.mrb[0].mxu0
    %733 = vmatprep.mubr.f32.mxu0 0.0
    %734 = vmatmul.mubr.f32.gmra.mrb[0].mxu0 %v642
    %v735 = vpop.f32.mrb[0].mxu0
    %v736 = vadd.f32 0.0, %v735
    %v737 = vpop.f32.mrb[0].mxu0
    %738 = vmatprep.mubr.f32.mxu0 0.0
    %739 = vmatmul.mubr.f32.gmra.mrb[0].mxu0 %v645
    %v740 = vpop.f32.mrb[0].mxu0
    %v741 = vadd.f32 0.0, %v740
    %v742 = vpop.f32.mrb[0].mxu0
    %743 = vmatprep.mubr.f32.mxu0 0.0
    %744 = vmatmul.mubr.f32.gmra.mrb[0].mxu0 %v648
    %v745 = vpop.f32.mrb[0].mxu0
    %v746 = vadd.f32 0.0, %v745
    %v747 = vpop.f32.mrb[0].mxu0
    %748 = vmatprep.mubr.f32.mxu0 0.0
    %749 = vmatmul.mubr.f32.gmra.mrb[0].mxu0 %v651
    %v750 = vpop.f32.mrb[0].mxu0
    %v751 = vadd.f32 0.0, %v750
    %v752 = vpop.f32.mrb[0].mxu0
    %753 = vmatprep.mubr.f32.mxu0 0.0
    %754 = vmatmul.mubr.f32.gmra.mrb[0].mxu0 %v654
    %v755 = vpop.f32.mrb[0].mxu0
    %v756 = vadd.f32 0.0, %v755
    %v757 = vpop.f32.mrb[0].mxu0
    %758 = vmatprep.mubr.f32.mxu0 0.0
    %759 = vmatmul.mubr.f32.gmra.mrb[0].mxu0 %v657
    %v760 = vpop.f32.mrb[0].mxu0
    %v761 = vadd.f32 0.0, %v760
    %v762 = vpop.f32.mrb[0].mxu0
    %763 = vdwg.mxu0
    %764 = vxpose.xlu0.b32.start [1/16] %v726, 128
    %765 = vxpose.xlu0.b32.cont [2/16] %v731, 128
    %766 = vxpose.xlu0.b32.cont [3/16] 0.0, 128
    %767 = vxpose.xlu0.b32.cont [4/16] 0.0, 128
    %768 = vxpose.xlu0.b32.cont [5/16] 0.0, 128
    %769 = vxpose.xlu0.b32.cont [6/16] 0.0, 128
    %770 = vxpose.xlu0.b32.cont [7/16] 0.0, 128
    %771 = vxpose.xlu0.b32.cont [8/16] 0.0, 128
    %772 = vxpose.xlu0.b32.cont [9/16] 0.0, 128
    %773 = vxpose.xlu0.b32.cont [10/16] 0.0, 128
    %774 = vxpose.xlu0.b32.cont [11/16] 0.0, 128
    %775 = vxpose.xlu0.b32.cont [12/16] 0.0, 128
    %776 = vxpose.xlu0.b32.cont [13/16] 0.0, 128
    %777 = vxpose.xlu0.b32.cont [14/16] 0.0, 128
    %778 = vxpose.xlu0.b32.cont [15/16] 0.0, 128
    %779 = vxpose.xlu0.b32.end [16/16] 0.0, 128
    %v780 = vpop.trf.xlu0
    %v781 = vpop.trf.xlu0
    %v782 = vpop.trf.xlu0
    %v783 = vpop.trf.xlu0
    %v784 = vpop.trf.xlu0
    %v785 = vpop.trf.xlu0
    %v786 = vpop.trf.xlu0
    %v787 = vpop.trf.xlu0
    %v788 = vpop.trf.xlu0
    %v789 = vpop.trf.xlu0
    %v790 = vpop.trf.xlu0
    %v791 = vpop.trf.xlu0
    %v792 = vpop.trf.xlu0
    %v793 = vpop.trf.xlu0
    %v794 = vpop.trf.xlu0
    %v795 = vpop.trf.xlu0
    %796 = vxpose.xlu0.b32.start [1/16] %v736, 128
    %797 = vxpose.xlu0.b32.cont [2/16] %v741, 128
    %798 = vxpose.xlu0.b32.cont [3/16] 0.0, 128
    %799 = vxpose.xlu0.b32.cont [4/16] 0.0, 128
    %800 = vxpose.xlu0.b32.cont [5/16] 0.0, 128
    %801 = vxpose.xlu0.b32.cont [6/16] 0.0, 128
    %802 = vxpose.xlu0.b32.cont [7/16] 0.0, 128
    %803 = vxpose.xlu0.b32.cont [8/16] 0.0, 128
    %804 = vxpose.xlu0.b32.cont [9/16] 0.0, 128
    %805 = vxpose.xlu0.b32.cont [10/16] 0.0, 128
    %806 = vxpose.xlu0.b32.cont [11/16] 0.0, 128
    %807 = vxpose.xlu0.b32.cont [12/16] 0.0, 128
    %808 = vxpose.xlu0.b32.cont [13/16] 0.0, 128
    %809 = vxpose.xlu0.b32.cont [14/16] 0.0, 128
    %810 = vxpose.xlu0.b32.cont [15/16] 0.0, 128
    %811 = vxpose.xlu0.b32.end [16/16] 0.0, 128
    %v812 = vpop.trf.xlu0
    %v813 = vpop.trf.xlu0
    %v814 = vpop.trf.xlu0
    %v815 = vpop.trf.xlu0
    %v816 = vpop.trf.xlu0
    %v817 = vpop.trf.xlu0
    %v818 = vpop.trf.xlu0
    %v819 = vpop.trf.xlu0
    %v820 = vpop.trf.xlu0
    %v821 = vpop.trf.xlu0
    %v822 = vpop.trf.xlu0
    %v823 = vpop.trf.xlu0
    %v824 = vpop.trf.xlu0
    %v825 = vpop.trf.xlu0
    %v826 = vpop.trf.xlu0
    %v827 = vpop.trf.xlu0
    %828 = vxpose.xlu0.b32.start [1/16] %v746, 128
    %829 = vxpose.xlu0.b32.cont [2/16] %v751, 128
    %830 = vxpose.xlu0.b32.cont [3/16] 0.0, 128
    %831 = vxpose.xlu0.b32.cont [4/16] 0.0, 128
    %832 = vxpose.xlu0.b32.cont [5/16] 0.0, 128
    %833 = vxpose.xlu0.b32.cont [6/16] 0.0, 128
    %834 = vxpose.xlu0.b32.cont [7/16] 0.0, 128
    %835 = vxpose.xlu0.b32.cont [8/16] 0.0, 128
    %836 = vxpose.xlu0.b32.cont [9/16] 0.0, 128
    %837 = vxpose.xlu0.b32.cont [10/16] 0.0, 128
    %838 = vxpose.xlu0.b32.cont [11/16] 0.0, 128
    %839 = vxpose.xlu0.b32.cont [12/16] 0.0, 128
    %840 = vxpose.xlu0.b32.cont [13/16] 0.0, 128
    %841 = vxpose.xlu0.b32.cont [14/16] 0.0, 128
    %842 = vxpose.xlu0.b32.cont [15/16] 0.0, 128
    %843 = vxpose.xlu0.b32.end [16/16] 0.0, 128
    %v844 = vpop.trf.xlu0
    %v845 = vpop.trf.xlu0
    %v846 = vpop.trf.xlu0
    %v847 = vpop.trf.xlu0
    %v848 = vpop.trf.xlu0
    %v849 = vpop.trf.xlu0
    %v850 = vpop.trf.xlu0
    %v851 = vpop.trf.xlu0
    %v852 = vpop.trf.xlu0
    %v853 = vpop.trf.xlu0
    %v854 = vpop.trf.xlu0
    %v855 = vpop.trf.xlu0
    %v856 = vpop.trf.xlu0
    %v857 = vpop.trf.xlu0
    %v858 = vpop.trf.xlu0
    %v859 = vpop.trf.xlu0
    %860 = vxpose.xlu0.b32.start [1/16] %v756, 128
    %861 = vxpose.xlu0.b32.cont [2/16] %v761, 128
    %862 = vxpose.xlu0.b32.cont [3/16] 0.0, 128
    %863 = vxpose.xlu0.b32.cont [4/16] 0.0, 128
    %864 = vxpose.xlu0.b32.cont [5/16] 0.0, 128
    %865 = vxpose.xlu0.b32.cont [6/16] 0.0, 128
    %866 = vxpose.xlu0.b32.cont [7/16] 0.0, 128
    %867 = vxpose.xlu0.b32.cont [8/16] 0.0, 128
    %868 = vxpose.xlu0.b32.cont [9/16] 0.0, 128
    %869 = vxpose.xlu0.b32.cont [10/16] 0.0, 128
    %870 = vxpose.xlu0.b32.cont [11/16] 0.0, 128
    %871 = vxpose.xlu0.b32.cont [12/16] 0.0, 128
    %872 = vxpose.xlu0.b32.cont [13/16] 0.0, 128
    %873 = vxpose.xlu0.b32.cont [14/16] 0.0, 128
    %874 = vxpose.xlu0.b32.cont [15/16] 0.0, 128
    %875 = vxpose.xlu0.b32.end [16/16] 0.0, 128
    %v876 = vpop.trf.xlu0
    %v877 = vpop.trf.xlu0
    %v878 = vpop.trf.xlu0
    %v879 = vpop.trf.xlu0
    %v880 = vpop.trf.xlu0
    %v881 = vpop.trf.xlu0
    %v882 = vpop.trf.xlu0
    %v883 = vpop.trf.xlu0
    %v884 = vpop.trf.xlu0
    %v885 = vpop.trf.xlu0
    %v886 = vpop.trf.xlu0
    %v887 = vpop.trf.xlu0
    %v888 = vpop.trf.xlu0
    %v889 = vpop.trf.xlu0
    %v890 = vpop.trf.xlu0
    %v891 = vpop.trf.xlu0
    %v893 = vsel %vm72, %v780, 0
    %v896 = vsel %vm72, %v781, 0
    %v899 = vsel %vm72, %v812, 0
    %v902 = vsel %vm72, %v813, 0
    %v905 = vsel %vm72, %v844, 0
    %v908 = vsel %vm72, %v845, 0
    %v911 = vsel %vm72, %v876, 0
    %v914 = vsel %vm72, %v877, 0
    %916 = vmatprep.subr.mxu0 0.0
    %917 = vmatpush1.msra.mxu0 %v633
    %918 = vmatprep.subr.mxu0 0.0
    %919 = vmatpush1.msra.mxu0 %v634
    %920 = vmatprep.subr.mxu0 0.0
    %921 = vmatpush1.msra.mxu0 0.0
    %922 = vmatprep.subr.mxu0 0.0
    %923 = vmatpush1.msra.mxu0 0.0
    %924 = vmatprep.subr.mxu0 0.0
    %925 = vmatpush1.msra.mxu0 0.0
    %926 = vmatprep.subr.mxu0 0.0
    %927 = vmatpush1.msra.mxu0 0.0
    %928 = vmatprep.subr.mxu0 0.0
    %929 = vmatpush1.msra.mxu0 0.0
    %930 = vmatprep.subr.mxu0 0.0
    %931 = vmatpush1.msra.mxu0 0.0
    %932 = vmatprep.subr.mxu0 0.0
    %933 = vmatpush1.msra.mxu0 0.0
    %934 = vmatprep.subr.mxu0 0.0
    %935 = vmatpush1.msra.mxu0 0.0
    %936 = vmatprep.subr.mxu0 0.0
    %937 = vmatpush1.msra.mxu0 0.0
    %938 = vmatprep.subr.mxu0 0.0
    %939 = vmatpush1.msra.mxu0 0.0
    %940 = vmatprep.subr.mxu0 0.0
    %941 = vmatpush1.msra.mxu0 0.0
    %942 = vmatprep.subr.mxu0 0.0
    %943 = vmatpush1.msra.mxu0 0.0
    %944 = vmatprep.subr.mxu0 0.0
    %945 = vmatpush1.msra.mxu0 0.0
    %946 = vmatprep.subr.mxu0 0.0
    %947 = vmatpush1.msra.mxu0 0.0
    %948 = vmatprep.subr.mxu0 0.0
    %949 = vmatpush1.msra.mxu0 0.0
    %950 = vmatprep.subr.mxu0 0.0
    %951 = vmatpush1.msra.mxu0 0.0
    %952 = vmatprep.subr.mxu0 0.0
    %953 = vmatpush1.msra.mxu0 0.0
    %954 = vmatprep.subr.mxu0 0.0
    %955 = vmatpush1.msra.mxu0 0.0
    %956 = vmatprep.subr.mxu0 0.0
    %957 = vmatpush1.msra.mxu0 0.0
    %958 = vmatprep.subr.mxu0 0.0
    %959 = vmatpush1.msra.mxu0 0.0
    %960 = vmatprep.subr.mxu0 0.0
    %961 = vmatpush1.msra.mxu0 0.0
    %962 = vmatprep.subr.mxu0 0.0
    %963 = vmatpush1.msra.mxu0 0.0
    %964 = vmatprep.subr.mxu0 0.0
    %965 = vmatpush1.msra.mxu0 0.0
    %966 = vmatprep.subr.mxu0 0.0
    %967 = vmatpush1.msra.mxu0 0.0
    %968 = vmatprep.subr.mxu0 0.0
    %969 = vmatpush1.msra.mxu0 0.0
    %970 = vmatprep.subr.mxu0 0.0
    %971 = vmatpush1.msra.mxu0 0.0
    %972 = vmatprep.subr.mxu0 0.0
    %973 = vmatpush1.msra.mxu0 0.0
    %974 = vmatprep.subr.mxu0 0.0
    %975 = vmatpush1.msra.mxu0 0.0
    %976 = vmatprep.subr.mxu0 0.0
    %977 = vmatpush1.msra.mxu0 0.0
    %978 = vmatprep.subr.mxu0 0.0
    %979 = vmatpush1.msra.mxu0 0.0
    %980 = vmatprep.mubr.f32.mxu0 0.0
    %981 = vmatmul.mubr.f32.gmra.mrb[0].mxu0 %v893
    %v982 = vpop.f32.mrb[0].mxu0
    %v983 = vadd.f32 0.0, %v982
    %v984 = vpop.f32.mrb[0].mxu0
    %985 = vmatprep.mubr.f32.mxu0 0.0
    %986 = vmatmul.mubr.f32.gmra.mrb[0].mxu0 %v896
    %v987 = vpop.f32.mrb[0].mxu0
    %v988 = vadd.f32 0.0, %v987
    %v989 = vpop.f32.mrb[0].mxu0
    %990 = vmatprep.mubr.f32.mxu0 0.0
    %991 = vmatmul.mubr.f32.gmra.mrb[0].mxu0 %v899
    %v992 = vpop.f32.mrb[0].mxu0
    %v993 = vadd.f32 0.0, %v992
    %v994 = vpop.f32.mrb[0].mxu0
    %995 = vmatprep.mubr.f32.mxu0 0.0
    %996 = vmatmul.mubr.f32.gmra.mrb[0].mxu0 %v902
    %v997 = vpop.f32.mrb[0].mxu0
    %v998 = vadd.f32 0.0, %v997
    %v999 = vpop.f32.mrb[0].mxu0
    %1000 = vmatprep.mubr.f32.mxu0 0.0
    %1001 = vmatmul.mubr.f32.gmra.mrb[0].mxu0 %v905
    %v1002 = vpop.f32.mrb[0].mxu0
    %v1003 = vadd.f32 0.0, %v1002
    %v1004 = vpop.f32.mrb[0].mxu0
    %1005 = vmatprep.mubr.f32.mxu0 0.0
    %1006 = vmatmul.mubr.f32.gmra.mrb[0].mxu0 %v908
    %v1007 = vpop.f32.mrb[0].mxu0
    %v1008 = vadd.f32 0.0, %v1007
    %v1009 = vpop.f32.mrb[0].mxu0
    %1010 = vmatprep.mubr.f32.mxu0 0.0
    %1011 = vmatmul.mubr.f32.gmra.mrb[0].mxu0 %v911
    %v1012 = vpop.f32.mrb[0].mxu0
    %v1013 = vadd.f32 0.0, %v1012
    %v1014 = vpop.f32.mrb[0].mxu0
    %1015 = vmatprep.mubr.f32.mxu0 0.0
    %1016 = vmatmul.mubr.f32.gmra.mrb[0].mxu0 %v914
    %v1017 = vpop.f32.mrb[0].mxu0
    %v1018 = vadd.f32 0.0, %v1017
    %v1019 = vpop.f32.mrb[0].mxu0
    %1020 = vdwg.mxu0
    %1021 = vxpose.xlu0.b32.start [1/16] %v983, 128
    %1022 = vxpose.xlu0.b32.cont [2/16] %v988, 128
    %1023 = vxpose.xlu0.b32.cont [3/16] 0.0, 128
    %1024 = vxpose.xlu0.b32.cont [4/16] 0.0, 128
    %1025 = vxpose.xlu0.b32.cont [5/16] 0.0, 128
    %1026 = vxpose.xlu0.b32.cont [6/16] 0.0, 128
    %1027 = vxpose.xlu0.b32.cont [7/16] 0.0, 128
    %1028 = vxpose.xlu0.b32.cont [8/16] 0.0, 128
    %1029 = vxpose.xlu0.b32.cont [9/16] 0.0, 128
    %1030 = vxpose.xlu0.b32.cont [10/16] 0.0, 128
    %1031 = vxpose.xlu0.b32.cont [11/16] 0.0, 128
    %1032 = vxpose.xlu0.b32.cont [12/16] 0.0, 128
    %1033 = vxpose.xlu0.b32.cont [13/16] 0.0, 128
    %1034 = vxpose.xlu0.b32.cont [14/16] 0.0, 128
    %1035 = vxpose.xlu0.b32.cont [15/16] 0.0, 128
    %1036 = vxpose.xlu0.b32.end [16/16] 0.0, 128
    %v1037 = vpop.trf.xlu0
    %v1038 = vpop.trf.xlu0
    %v1039 = vpop.trf.xlu0
    %v1040 = vpop.trf.xlu0
    %v1041 = vpop.trf.xlu0
    %v1042 = vpop.trf.xlu0
    %v1043 = vpop.trf.xlu0
    %v1044 = vpop.trf.xlu0
    %v1045 = vpop.trf.xlu0
    %v1046 = vpop.trf.xlu0
    %v1047 = vpop.trf.xlu0
    %v1048 = vpop.trf.xlu0
    %v1049 = vpop.trf.xlu0
    %v1050 = vpop.trf.xlu0
    %v1051 = vpop.trf.xlu0
    %v1052 = vpop.trf.xlu0
    %1053 = vxpose.xlu0.b32.start [1/16] %v993, 128
    %1054 = vxpose.xlu0.b32.cont [2/16] %v998, 128
    %1055 = vxpose.xlu0.b32.cont [3/16] 0.0, 128
    %1056 = vxpose.xlu0.b32.cont [4/16] 0.0, 128
    %1057 = vxpose.xlu0.b32.cont [5/16] 0.0, 128
    %1058 = vxpose.xlu0.b32.cont [6/16] 0.0, 128
    %1059 = vxpose.xlu0.b32.cont [7/16] 0.0, 128
    %1060 = vxpose.xlu0.b32.cont [8/16] 0.0, 128
    %1061 = vxpose.xlu0.b32.cont [9/16] 0.0, 128
    %1062 = vxpose.xlu0.b32.cont [10/16] 0.0, 128
    %1063 = vxpose.xlu0.b32.cont [11/16] 0.0, 128
    %1064 = vxpose.xlu0.b32.cont [12/16] 0.0, 128
    %1065 = vxpose.xlu0.b32.cont [13/16] 0.0, 128
    %1066 = vxpose.xlu0.b32.cont [14/16] 0.0, 128
    %1067 = vxpose.xlu0.b32.cont [15/16] 0.0, 128
    %1068 = vxpose.xlu0.b32.end [16/16] 0.0, 128
    %v1069 = vpop.trf.xlu0
    %v1070 = vpop.trf.xlu0
    %v1071 = vpop.trf.xlu0
    %v1072 = vpop.trf.xlu0
    %v1073 = vpop.trf.xlu0
    %v1074 = vpop.trf.xlu0
    %v1075 = vpop.trf.xlu0
    %v1076 = vpop.trf.xlu0
    %v1077 = vpop.trf.xlu0
    %v1078 = vpop.trf.xlu0
    %v1079 = vpop.trf.xlu0
    %v1080 = vpop.trf.xlu0
    %v1081 = vpop.trf.xlu0
    %v1082 = vpop.trf.xlu0
    %v1083 = vpop.trf.xlu0
    %v1084 = vpop.trf.xlu0
    %1085 = vxpose.xlu0.b32.start [1/16] %v1003, 128
    %1086 = vxpose.xlu0.b32.cont [2/16] %v1008, 128
    %1087 = vxpose.xlu0.b32.cont [3/16] 0.0, 128
    %1088 = vxpose.xlu0.b32.cont [4/16] 0.0, 128
    %1089 = vxpose.xlu0.b32.cont [5/16] 0.0, 128
    %1090 = vxpose.xlu0.b32.cont [6/16] 0.0, 128
    %1091 = vxpose.xlu0.b32.cont [7/16] 0.0, 128
    %1092 = vxpose.xlu0.b32.cont [8/16] 0.0, 128
    %1093 = vxpose.xlu0.b32.cont [9/16] 0.0, 128
    %1094 = vxpose.xlu0.b32.cont [10/16] 0.0, 128
    %1095 = vxpose.xlu0.b32.cont [11/16] 0.0, 128
    %1096 = vxpose.xlu0.b32.cont [12/16] 0.0, 128
    %1097 = vxpose.xlu0.b32.cont [13/16] 0.0, 128
    %1098 = vxpose.xlu0.b32.cont [14/16] 0.0, 128
    %1099 = vxpose.xlu0.b32.cont [15/16] 0.0, 128
    %1100 = vxpose.xlu0.b32.end [16/16] 0.0, 128
    %v1101 = vpop.trf.xlu0
    %v1102 = vpop.trf.xlu0
    %v1103 = vpop.trf.xlu0
    %v1104 = vpop.trf.xlu0
    %v1105 = vpop.trf.xlu0
    %v1106 = vpop.trf.xlu0
    %v1107 = vpop.trf.xlu0
    %v1108 = vpop.trf.xlu0
    %v1109 = vpop.trf.xlu0
    %v1110 = vpop.trf.xlu0
    %v1111 = vpop.trf.xlu0
    %v1112 = vpop.trf.xlu0
    %v1113 = vpop.trf.xlu0
    %v1114 = vpop.trf.xlu0
    %v1115 = vpop.trf.xlu0
    %v1116 = vpop.trf.xlu0
    %1117 = vxpose.xlu0.b32.start [1/16] %v1013, 128
    %1118 = vxpose.xlu0.b32.cont [2/16] %v1018, 128
    %1119 = vxpose.xlu0.b32.cont [3/16] 0.0, 128
    %1120 = vxpose.xlu0.b32.cont [4/16] 0.0, 128
    %1121 = vxpose.xlu0.b32.cont [5/16] 0.0, 128
    %1122 = vxpose.xlu0.b32.cont [6/16] 0.0, 128
    %1123 = vxpose.xlu0.b32.cont [7/16] 0.0, 128
    %1124 = vxpose.xlu0.b32.cont [8/16] 0.0, 128
    %1125 = vxpose.xlu0.b32.cont [9/16] 0.0, 128
    %1126 = vxpose.xlu0.b32.cont [10/16] 0.0, 128
    %1127 = vxpose.xlu0.b32.cont [11/16] 0.0, 128
    %1128 = vxpose.xlu0.b32.cont [12/16] 0.0, 128
    %1129 = vxpose.xlu0.b32.cont [13/16] 0.0, 128
    %1130 = vxpose.xlu0.b32.cont [14/16] 0.0, 128
    %1131 = vxpose.xlu0.b32.cont [15/16] 0.0, 128
    %1132 = vxpose.xlu0.b32.end [16/16] 0.0, 128
    %v1133 = vpop.trf.xlu0
    %v1134 = vpop.trf.xlu0
    %v1135 = vpop.trf.xlu0
    %v1136 = vpop.trf.xlu0
    %v1137 = vpop.trf.xlu0
    %v1138 = vpop.trf.xlu0
    %v1139 = vpop.trf.xlu0
    %v1140 = vpop.trf.xlu0
    %v1141 = vpop.trf.xlu0
    %v1142 = vpop.trf.xlu0
    %v1143 = vpop.trf.xlu0
    %v1144 = vpop.trf.xlu0
    %v1145 = vpop.trf.xlu0
    %v1146 = vpop.trf.xlu0
    %v1147 = vpop.trf.xlu0
    %v1148 = vpop.trf.xlu0
    %s1149 = scalar_lea.vmem [#allocation7], 64
    %1150 = vst.msk [vmem:[%s1149] sm:$0xff] %vm72, %v1037
    %1151 = vst.msk [vmem:[%s1149 + $0x8] sm:$0xff] %vm72, %v1038
    %1152 = vst.msk [vmem:[%s1149 + $0x10] sm:$0xff] %vm72, %v1069
    %1153 = vst.msk [vmem:[%s1149 + $0x18] sm:$0xff] %vm72, %v1070
    %1154 = vst.msk [vmem:[%s1149 + $0x20] sm:$0xff] %vm72, %v1101
    %1155 = vst.msk [vmem:[%s1149 + $0x28] sm:$0xff] %vm72, %v1102
    %1156 = vst.msk [vmem:[%s1149 + $0x30] sm:$0xff] %vm72, %v1133
    %1157 = vst.msk [vmem:[%s1149 + $0x38] sm:$0xff] %vm72, %v1134
    // Predicated region
    $region10: #{tpu_custom_call.1} parent=1 // pred_check
      _
    $region11: #{tpu_custom_call.1} parent=1 // pred_check_branch
      %1159 = sbr.rel (0) target = $region13
    $region12: #{tpu_custom_call.1} parent=1 // pred_region
      %s1161 = ssub.s32 2048, 2048
      %1162 = vsyncadd [#allocation6], %s1161
      %s1163 = sshll.u32 [#allocation7], 4
      %s1164 = int_to_ptr.vmem [resolvable:$true] %s1163
      %1169 = dma.vmem_to_hbm [thread:$0]  %s1164, 2048, %s2, [#allocation6], 128, 128, 8
    $region13: #{tpu_custom_call.1} parent=1 // pred_fallthru
      _
    // Predicated region
    $region14: #{tpu_custom_call.1} parent=1 // pred_check
      _
    $region15: #{tpu_custom_call.1} parent=1 // pred_check_branch
      %1171 = sbr.rel (0) target = $region17
    $region16: #{tpu_custom_call.1} parent=1 // pred_region
      %1172 = dma.done [#allocation6], 2048
    $region17: #{tpu_custom_call.1} parent=1 // pred_fallthru
      _
    %1173 = vsyncpa [#allocation5], 1
    %1174 = vsyncpa [#allocation6], 1

</llo_original>
